<compile_context>
chip_gen: v5e
topology: v5e:2x2
jax: 0.10.0
libtpu: 0.0.40
codegen_flags: <defaults>
</compile_context>

<pallas_src>
import functools

import jax
import jax.numpy as jnp
from jax.experimental import pallas as pl
from jax.experimental.pallas import tpu as pltpu

_MIB = 1024 * 1024


def _rmsnorm_kernel(x_ref, w_ref, o_ref, *, eps):
    # x_ref: [block_m, D] row tile; w_ref: [1, D] (resident, broadcasts over rows).
    x = x_ref[...].astype(jnp.float32)
    ms = jnp.mean(x * x, axis=-1, keepdims=True)          # XLU lane reduce
    inv = jax.lax.rsqrt(ms + eps)                          # EUP rsqrt
    o_ref[...] = (x * inv * w_ref[...].astype(jnp.float32)).astype(o_ref.dtype)


def _round_up(x, m):
    return ((x + m - 1) // m) * m


def _device_kind():
    try:
        return jax.devices()[0].device_kind.lower()
    except Exception:
        return ""


def _vmem_capacity_bytes():
    try:
        return int(pltpu.get_tpu_info().vmem_capacity_bytes)
    except Exception:
        kind = _device_kind()
        # v7x has 64 MiB per TensorCore; v5e/v6e have 128 MiB.
        return 64 * _MIB if ("7x" in kind or "v7" in kind) else 128 * _MIB


def _use_core_parallel():
    # Only v7x has 2 TensorCores per chip worth explicit core-level sharding.
    kind = _device_kind()
    return (("7x" in kind or "v7" in kind)
            and getattr(pltpu, "CORE_PARALLEL", None) is not None)


def _pick_block_m(n_rows, d, itemsize, vmem_cap):
    # Pipelined buffers live in the I/O dtype: 2 bufs x (in + out) per row.
    per_row_bytes = 2 * 2 * d * itemsize
    # Generation-aware budget: ~32 MiB on 128-MiB chips, ~16 MiB on 64-MiB v7x.
    vmem_budget = min(32 * _MIB, vmem_cap // 4)
    bm = vmem_budget // per_row_bytes
    bm = max(8, min(2048, (bm // 8) * 8))
    # Keep >= ~4 grid steps so DMA/compute overlap exists and both v7x cores
    # get work; a few extra steps only cost ~0.35 us each.
    bm = min(bm, max(8, _round_up(pl.cdiv(n_rows, 4), 8)))
    return int(bm)


@functools.partial(
    jax.jit, static_argnames=("eps", "block_m", "vmem_limit", "core_parallel"))
def _rmsnorm_2d(x2d, weight, *, eps, block_m, vmem_limit, core_parallel):
    rows, d = x2d.shape
    w_row = weight.reshape(1, d)

    dim_sem = (pltpu.CORE_PARALLEL,) if core_parallel else ("parallel",)

    return pl.pallas_call(
        functools.partial(_rmsnorm_kernel, eps=eps),
        out_shape=jax.ShapeDtypeStruct((rows, d), x2d.dtype),
        grid_spec=pltpu.PrefetchScalarGridSpec(
            num_scalar_prefetch=0,
            grid=(pl.cdiv(rows, block_m),),   # partial last tile -> masked writeback
            in_specs=[
                pl.BlockSpec((block_m, d), lambda i: (i, 0)),   # x row tile
                pl.BlockSpec((1, d), lambda i: (0, 0)),         # weight (resident)
            ],
            out_specs=pl.BlockSpec((block_m, d), lambda i: (i, 0)),
        ),
        compiler_params=pltpu.CompilerParams(
            dimension_semantics=dim_sem,
            vmem_limit_bytes=vmem_limit,
        ),
    )(x2d, w_row)


def rmsnorm(x, weight, *, eps=1e-6, block_m=None):
    """RMSNorm over the last dim. x: [..., D]; weight: [D]."""
    orig_shape = x.shape
    d = orig_shape[-1]
    x2d = x.reshape(-1, d)
    rows = x2d.shape[0]
    itemsize = x2d.dtype.itemsize
    vmem_cap = _vmem_capacity_bytes()

    # Even the minimum 8-row tile must fit double-buffered (in + out) in VMEM.
    if 2 * 2 * 8 * d * itemsize > vmem_cap - 16 * _MIB:
        # TODO(synk): add a chunked-D (two-pass) Pallas kernel for very wide
        # features; fall back to plain XLA so the op stays usable meanwhile.
        xf = x.astype(jnp.float32)
        rms = jnp.sqrt(jnp.mean(xf * xf, axis=-1, keepdims=True) + eps)
        return (weight.astype(jnp.float32) * (xf / rms)).astype(x.dtype)

    if block_m is None:
        block_m = _pick_block_m(rows, d, itemsize, vmem_cap)

    # vmem_limit = actual footprint (double-buffered in/out + weight) + headroom,
    # never the full physical VMEM of the chip.
    footprint = 2 * 2 * block_m * d * itemsize + 2 * d * itemsize
    vmem_limit = max(footprint + 4 * _MIB, 16 * _MIB)
    vmem_limit = min(vmem_limit, vmem_cap - 8 * _MIB)

    out = _rmsnorm_2d(
        x2d, weight, eps=float(eps), block_m=int(block_m),
        vmem_limit=int(vmem_limit), core_parallel=_use_core_parallel())
    return out.reshape(orig_shape)


if __name__ == "__main__":
    # Shapes consistent with the module: RMSNorm over the hidden dim of a
    # (batch, seq, dim) activation. dim multiple of 128 -> lane-dense I/O.
    batch, seq, dim = 2, 8, 256
    eps = 1e-6

    key = jax.random.PRNGKey(0)
    kx, kw, kx2 = jax.random.split(key, 3)
    x = jax.random.normal(kx, (batch, seq, dim), jnp.float32)
    # Module initializes weight to ones; perturb it so the scale path is tested.
    weight = 1.0 + 0.1 * jax.random.normal(kw, (dim,), jnp.float32)

    out = jax.block_until_ready(rmsnorm(x, weight, eps=eps))
    rms = jnp.sqrt(jnp.mean(x * x, axis=-1, keepdims=True) + eps)
    ref = weight * (x / rms)
    assert out.shape == x.shape
    assert jnp.allclose(out, ref, atol=1e-5, rtol=1e-5), "mismatch vs reference"

    # Partial-tile path: rows % block_m != 0 exercised via masked writeback.
    x2 = jax.random.normal(kx2, (3, 5, dim), jnp.float32)
    out2 = jax.block_until_ready(rmsnorm(x2, weight, eps=eps, block_m=8))
    rms2 = jnp.sqrt(jnp.mean(x2 * x2, axis=-1, keepdims=True) + eps)
    ref2 = weight * (x2 / rms2)
    assert jnp.allclose(out2, ref2, atol=1e-5, rtol=1e-5), "partial-tile mismatch"

    # bf16 I/O path (f32 math inside the kernel).
    xb = x.astype(jnp.bfloat16)
    outb = jax.block_until_ready(rmsnorm(xb, weight.astype(jnp.bfloat16), eps=eps))
    refb = weight * (xb.astype(jnp.float32)
                     / jnp.sqrt(jnp.mean(xb.astype(jnp.float32) ** 2,
                                         axis=-1, keepdims=True) + eps))
    assert jnp.allclose(outb.astype(jnp.float32), refb, atol=3e-2, rtol=3e-2), \
        "bf16 mismatch"

    print("KERNEL_OK")
</pallas_src>

<mosaic_0001>
module attributes {stable_mosaic.version = 11 : i64} {
  func.func @_rmsnorm_kernel(%arg0: i32, %arg1: memref<8x256xf32, #tpu.memory_space<vmem>>, %arg2: memref<1x256xf32, #tpu.memory_space<vmem>>, %arg3: memref<8x256xf32, #tpu.memory_space<vmem>>) attributes {dimension_semantics = [#tpu.dimension_semantics<parallel>], iteration_bounds = array<i64: 2>, scalar_prefetch = 0 : i64, scratch_operands = 0 : i64, tpu.core_type = #tpu.core_type<tc>, window_params = [{transform_indices = @transform_0, window_bounds = array<i64: 8, 256>}, {pipeline_mode = #tpu.pipeline_mode<synchronous>, transform_indices = @transform_1, window_bounds = array<i64: 1, 256>}, {transform_indices = @transform_2, window_bounds = array<i64: 8, 256>}]} {
    %c0 = arith.constant 0 : index
    %c0_0 = arith.constant 0 : index
    %0 = vector.load %arg1[%c0, %c0_0] : memref<8x256xf32, #tpu.memory_space<vmem>>, vector<8x256xf32>
    %1 = arith.mulf %0, %0 : vector<8x256xf32>
    %cst = arith.constant dense<0.000000e+00> : vector<8xf32>
    %2 = vector.multi_reduction <add>, %1, %cst [1] : vector<8x256xf32> to vector<8xf32>
    %3 = vector.shape_cast %2 : vector<8xf32> to vector<8x1xf32>
    %cst_1 = arith.constant 2.560000e+02 : f32
    %4 = vector.broadcast %cst_1 : f32 to vector<8x1xf32>
    %5 = arith.divf %3, %4 : vector<8x1xf32>
    %cst_2 = arith.constant 9.99999997E-7 : f32
    %6 = vector.broadcast %cst_2 : f32 to vector<8x1xf32>
    %7 = arith.addf %5, %6 : vector<8x1xf32>
    %8 = math.rsqrt %7 : vector<8x1xf32>
    %9 = vector.broadcast %8 : vector<8x1xf32> to vector<8x256xf32>
    %10 = arith.mulf %0, %9 : vector<8x256xf32>
    %c0_3 = arith.constant 0 : index
    %c0_4 = arith.constant 0 : index
    %11 = vector.load %arg2[%c0_3, %c0_4] : memref<1x256xf32, #tpu.memory_space<vmem>>, vector<1x256xf32>
    %12 = vector.broadcast %11 : vector<1x256xf32> to vector<8x256xf32>
    %13 = arith.mulf %10, %12 : vector<8x256xf32>
    %c0_5 = arith.constant 0 : index
    %c0_6 = arith.constant 0 : index
    %14 = vector.load %arg3[%c0_5, %c0_6] : memref<8x256xf32, #tpu.memory_space<vmem>>, vector<8x256xf32>
    tpu.vector_store %arg3[%c0_5, %c0_6], %13 {strides = array<i32>} : memref<8x256xf32, #tpu.memory_space<vmem>>, vector<8x256xf32>,
    return
  }
  func.func @transform_0(%arg0: i32) -> (i32, i32) {
    %c0_i32 = arith.constant 0 : i32
    %c0_i32_0 = arith.constant 0 : i32
    return %arg0, %c0_i32 : i32, i32
  }
  func.func @transform_1(%arg0: i32) -> (i32, i32) {
    %c0_i32 = arith.constant 0 : i32
    %c0_i32_0 = arith.constant 0 : i32
    %c0_i32_1 = arith.constant 0 : i32
    return %c0_i32, %c0_i32_0 : i32, i32
  }
  func.func @transform_2(%arg0: i32) -> (i32, i32) {
    %c0_i32 = arith.constant 0 : i32
    %c0_i32_0 = arith.constant 0 : i32
    return %arg0, %c0_i32 : i32, i32
  }
}

</mosaic_0001>

<llo_original>
// kernel: _rmsnorm_2d.1
$region0: #{_rmsnorm_2d.1}
  #allocation0 [shape = 'u32[]', space=smem, size = 0x4, offset = 0x4, fixed_abs, tag = 'smem constant byte address 0x4 - core index']
  #allocation1 [shape = 'u32[72,128]{1,0:T(1,128)}', space=vmem, size = 0x9000, scoped, tag = 'internal scratch']
  %s0 = inlined_call_operand.hbm [shape: f32[16,256], index: 0, kind: input, shape index: {}]
  %s1 = inlined_call_operand.hbm [shape: f32[1,256], index: 1, kind: input, shape index: {}]
  %s2 = inlined_call_operand.hbm [shape: f32[16,256], index: 2, kind: output, shape index: {}]
  %s3 = sld [smem:[#allocation0]]
  $region49: #{_rmsnorm_2d.1} parent=0
    _
  %s5 = ssub.s32 1, %s3
  %s6 = scalar_select 0, %s5, %s3
  $region1: #{_rmsnorm_2d.1} parent=0
    #allocation2 [shape = 'u8[16384]{0}', space=vmem, size = 0x4000, scoped, tag = 'input window, operand 0']
    #allocation3 [shape = 's32[2]{0}', space=sflag, size = 0x8, scoped, tag = 'scoped memory for _rmsnorm_2d.1']
    #allocation4 [shape = 's32[2]{0}', space=sflag, size = 0x8, scoped, tag = 'scoped memory for _rmsnorm_2d.1']
    #allocation5 [shape = 'u8[1024]{0}', space=vmem, size = 0x400, scoped, tag = 'input window, operand 1, single buffered']
    #allocation6 [shape = 's32[1]{0}', space=sflag, size = 0x4, scoped, tag = 'scoped memory for _rmsnorm_2d.1']
    #allocation7 [shape = 'u8[16384]{0}', space=vmem, size = 0x4000, scoped, tag = 'output window, operand 0']
    %7 = vsyncpa [#allocation3], 0
    %s8 = scalar_lea.sflag [#allocation3], 1
    %9 = vsyncpa %s8, 0
    %10 = vsyncpa [#allocation6], 0
    %11 = vsyncpa [#allocation4], 0
    %s12 = scalar_lea.sflag [#allocation4], 1
    %13 = vsyncpa %s12, 0
    loop: start=0, step=1, limit=4
    $region2: #{_rmsnorm_2d.1} parent=1 // loop_pre_header
      _
    $region3: #{_rmsnorm_2d.1} parent=1 // loop_header
      %s15 = sphi 0, %s19
      %p16 = scmp.ge.s32.totalorder %s15, 4
      %s25 = sphi 0, %s27
      %s28 = sphi 0, %s25
      %s29 = sphi 0, %s28
      %s45 = sphi 0, %s29
      %s49 = sphi 0, %s49
      %s51 = sphi 0, %s49
      %s52 = sphi 0, %s51
      %s66 = sphi 0, %s52
      %s72 = sphi 0, %s74
      %s75 = sphi 0, %s72
      %s76 = sphi 0, %s75
      %s92 = sphi 0, %s76
    $region4: #{_rmsnorm_2d.1} parent=1 // loop_header_branch
      %18 = sbr.rel (%p16) target = $region8
    $region5: #{_rmsnorm_2d.1} parent=1 // loop_body
      %s20 = ssub.s32 %s15, 1
      %s21 = ssub.s32 %s15, 2
      %s22 = sadd.s32 %s15, 1
      %s23 = ssub.s32 %s15, %s22
      %p24 = scmp.eq.s32.totalorder %s23, 0
      %s26 = sadd.s32 %s25, 1
      %s27 = scalar_select %p24, %s25, %s26
      %p30 = pneg %p24
      %p31 = scmp.eq.s32.totalorder %s15, 1
      %p32 = por %p30, %p31
      %p33 = scmp.ne.s32.totalorder %s25, %s28
      %p34 = scmp.eq.s32.totalorder %s15, 0
      %p35 = por %p33, %p34
      %p36 = scmp.ne.s32.totalorder %s25, %s28
      %p37 = scmp.eq.s32.totalorder %s20, 1
      %p38 = por %p36, %p37
      %p39 = scmp.ne.s32.totalorder %s28, %s29
      %p40 = scmp.eq.s32.totalorder %s20, 0
      %p41 = por %p39, %p40
      %p42 = scmp.ne.s32.totalorder %s28, %s29
      %p43 = scmp.eq.s32.totalorder %s21, 1
      %p44 = por %p42, %p43
      %p46 = scmp.ne.s32.totalorder %s29, %s45
      %p47 = scmp.eq.s32.totalorder %s21, 0
      %p48 = por %p46, %p47
      %s50 = sadd.s32 %s49, 1
      %p53 = scmp.eq.s32.totalorder %s15, 1
      %p54 = scmp.ne.s32.totalorder %s49, %s51
      %p55 = scmp.eq.s32.totalorder %s15, 0
      %p56 = por %p54, %p55
      %p57 = scmp.ne.s32.totalorder %s49, %s51
      %p58 = scmp.eq.s32.totalorder %s20, 1
      %p59 = por %p57, %p58
      %p60 = scmp.ne.s32.totalorder %s51, %s52
      %p61 = scmp.eq.s32.totalorder %s20, 0
      %p62 = por %p60, %p61
      %p63 = scmp.ne.s32.totalorder %s51, %s52
      %p64 = scmp.eq.s32.totalorder %s21, 1
      %p65 = por %p63, %p64
      %p67 = scmp.ne.s32.totalorder %s52, %s66
      %p68 = scmp.eq.s32.totalorder %s21, 0
      %p69 = por %p67, %p68
      %s70 = ssub.s32 %s15, %s22
      %p71 = scmp.eq.s32.totalorder %s70, 0
      %s73 = sadd.s32 %s72, 1
      %s74 = scalar_select %p71, %s72, %s73
      %p77 = pneg %p71
      %p78 = scmp.eq.s32.totalorder %s15, 1
      %p79 = por %p77, %p78
      %p80 = scmp.ne.s32.totalorder %s72, %s75
      %p81 = scmp.eq.s32.totalorder %s15, 0
      %p82 = por %p80, %p81
      %p83 = scmp.ne.s32.totalorder %s72, %s75
      %p84 = scmp.eq.s32.totalorder %s20, 1
      %p85 = por %p83, %p84
      %p86 = scmp.ne.s32.totalorder %s75, %s76
      %p87 = scmp.eq.s32.totalorder %s20, 0
      %p88 = por %p86, %p87
      %p89 = scmp.ne.s32.totalorder %s75, %s76
      %p90 = scmp.eq.s32.totalorder %s21, 1
      %p91 = por %p89, %p90
      %p93 = scmp.ne.s32.totalorder %s76, %s92
      %p94 = scmp.eq.s32.totalorder %s21, 0
      %p95 = por %p93, %p94
      %p96 = scmp.le.s32.totalorder 1, %s15
      %p97 = scmp.lt.s32.totalorder %s15, 3
      %p98 = pnand %p96, %p97
      %p99 = pneg %p98
      // Predicated region
      $region9: #{_rmsnorm_2d.1} parent=5 // pred_check
        _
      $region10: #{_rmsnorm_2d.1} parent=5 // pred_check_branch
        %101 = sbr.rel (%p98) target = $region12
      $region11: #{_rmsnorm_2d.1} parent=5 // pred_region
        %s102 = ssub.s32 %s15, 1
        // Predicated region
        $region13: #{_rmsnorm_2d.1} parent=11 // pred_check
          %p103 = pneg %p62
        $region14: #{_rmsnorm_2d.1} parent=11 // pred_check_branch
          %105 = sbr.rel (%p103) target = $region16
        $region15: #{_rmsnorm_2d.1} parent=11 // pred_region
          %107 = vsyncadd [#allocation6], 0
          %s109 = sshll.u32 %s1, 4
          %s110 = int_to_ptr.hbm [resolvable:$true] %s109
          %s111 = sshll.u32 [#allocation5], 4
          %s112 = int_to_ptr.vmem [resolvable:$true] %s111
          %114 = dma.hbm_to_vmem [thread:$0]  %s110, 32, %s112, [#allocation6]
        $region16: #{_rmsnorm_2d.1} parent=11 // pred_fallthru
          _
      $region12: #{_rmsnorm_2d.1} parent=5 // pred_fallthru
        _
      %p115 = scmp.lt.s32.totalorder %s15, 2
      // Predicated region
      $region17: #{_rmsnorm_2d.1} parent=5 // pred_check
        %p116 = pneg %p115
      $region18: #{_rmsnorm_2d.1} parent=5 // pred_check_branch
        %118 = sbr.rel (%p116) target = $region20
      $region19: #{_rmsnorm_2d.1} parent=5 // pred_region
        // Predicated region
        $region21: #{_rmsnorm_2d.1} parent=19 // pred_check
          %p119 = pneg %p35
        $region22: #{_rmsnorm_2d.1} parent=19 // pred_check_branch
          %121 = sbr.rel (%p119) target = $region24
        $region23: #{_rmsnorm_2d.1} parent=19 // pred_region
          %s122 = sand.u32 %s25, 1
          %s123 = scalar_lea.sflag [#allocation3], %s122
          %s124 = sand.u32 %s25, 1
          %s125 = smul.addr %s124, 16
          %s126 = scalar_lea.vmem [#allocation2], %s125
          %128 = vsyncadd %s123, 0
          %s129 = smul.addr %s15, 2
          %s130 = smul.addr %s129, 8
          %s131 = scalar_lea.hbm %s0, %s130
          %s133 = sshll.u32 %s131, 4
          %s134 = int_to_ptr.hbm [resolvable:$true] %s133
          %s135 = sshll.u32 %s126, 4
          %s136 = int_to_ptr.vmem [resolvable:$true] %s135
          %138 = dma.hbm_to_vmem [thread:$0]  %s134, 256, %s136, %s123
        $region24: #{_rmsnorm_2d.1} parent=19 // pred_fallthru
          _
      $region20: #{_rmsnorm_2d.1} parent=5 // pred_fallthru
        _
      %p139 = scmp.le.s32.totalorder 1, %s15
      %p140 = scmp.lt.s32.totalorder %s15, 3
      %p141 = pnand %p139, %p140
      %p142 = pneg %p141
      // Predicated region
      $region25: #{_rmsnorm_2d.1} parent=5 // pred_check
        _
      $region26: #{_rmsnorm_2d.1} parent=5 // pred_check_branch
        %144 = sbr.rel (%p141) target = $region28
      $region27: #{_rmsnorm_2d.1} parent=5 // pred_region
        %s145 = ssub.s32 %s15, 1
        %s146 = sand.u32 %s28, 1
        %s147 = scalar_lea.sflag [#allocation3], %s146
        %s148 = sand.u32 %s28, 1
        %s149 = smul.addr %s148, 16
        %s150 = scalar_lea.vmem [#allocation2], %s149
        // Predicated region
        $region29: #{_rmsnorm_2d.1} parent=27 // pred_check
          %p151 = pneg %p41
        $region30: #{_rmsnorm_2d.1} parent=27 // pred_check_branch
          %153 = sbr.rel (%p151) target = $region32
        $region31: #{_rmsnorm_2d.1} parent=27 // pred_region
          %155 = dma.done %s147, 256
        $region32: #{_rmsnorm_2d.1} parent=27 // pred_fallthru
          _
        // Predicated region
        $region33: #{_rmsnorm_2d.1} parent=27 // pred_check
          %p156 = pneg %p62
        $region34: #{_rmsnorm_2d.1} parent=27 // pred_check_branch
          %158 = sbr.rel (%p156) target = $region36
        $region35: #{_rmsnorm_2d.1} parent=27 // pred_region
          %160 = dma.done [#allocation6], 32
        $region36: #{_rmsnorm_2d.1} parent=27 // pred_fallthru
          _
        %s161 = sand.u32 %s28, 1
        %s162 = scalar_lea.sflag [#allocation3], %s161
        %s163 = sand.u32 %s28, 1
        %s164 = smul.addr %s163, 16
        %s165 = scalar_lea.vmem [#allocation2], %s164
        %p166 = pneg %p41
        %p167 = pneg %p38
        %p168 = pneg %p62
        %p169 = pneg %p59
        %p170 = pneg %p88
        %p171 = pneg %p85
        %s172 = sand.u32 %s75, 1
        %s173 = scalar_lea.sflag [#allocation4], %s172
        %s174 = sand.u32 %s75, 1
        %s175 = smul.addr %s174, 16
        %s176 = scalar_lea.vmem [#allocation7], %s175
        %v177 = vld [vmem:[%s150] sm:$0xff]
        %v178 = vld [vmem:[%s150 + $0x8] sm:$0xff]
        %v179 = vmul.f32 %v177, %v177
        %v180 = vmul.f32 %v178, %v178
        %v181 = vadd.f32 %v179, %v180
        %182 = vadd.xlane.f32.xlu0 %v181
        %v183 = vpop.xlane.xlu0 %182
        %v184 = vrcp.pop 256.0
        %v185 = vmul.f32 256.0, %v184
        %v186 = vsub.f32 1.0, %v185
        %v187 = vmul.f32 %v184, %v186
        %v188 = vadd.f32 %v184, %v187
        %vm189 = vweird.f32 %v184
        %v190 = vsel %vm189, %v184, %v188
        %v191 = vmul.f32 %v183, %v190
        %v192 = vadd.f32 %v191, 1e-06
        %v193 = vrsqrt.pop %v192
        %v194 = vmul.f32 %v193, %v192
        %v195 = vmul.f32 %v194, %v193
        %v196 = vmul.f32 0.5, %v195
        %v197 = vsub.f32 1.5, %v196
        %v198 = vmul.f32 %v193, %v197
        %vm199 = vweird.f32 %v192
        %vm200 = vweird.f32 %v193
        %vm201 = vmor %vm199, %vm200
        %v202 = vsel %vm201, %v193, %v198
        %v203 = vmul.f32 %v177, %v202
        %v204 = vmul.f32 %v178, %v202
        %v205 = vld [vmem:[#allocation5] sm:$0x3]
        %v207 = vperm.slane %v205, 0
        %v208 = vperm.slane %v205, 1
        %v211 = vmul.f32 %v203, %v207
        %v212 = vmul.f32 %v204, %v208
        %213 = vst [vmem:[%s176] sm:$0xff] %v211
        %214 = vst [vmem:[%s176 + $0x8] sm:$0xff] %v212
        %s215 = sand.u32 %s75, 1
        %s216 = scalar_lea.sflag [#allocation4], %s215
        %s217 = sand.u32 %s75, 1
        %s218 = smul.addr %s217, 16
        %s219 = scalar_lea.vmem [#allocation7], %s218
        // Predicated region
        $region37: #{_rmsnorm_2d.1} parent=27 // pred_check
          %p220 = pneg %p85
        $region38: #{_rmsnorm_2d.1} parent=27 // pred_check_branch
          %222 = sbr.rel (%p220) target = $region40
        $region39: #{_rmsnorm_2d.1} parent=27 // pred_region
          %224 = vsyncadd %s216, 0
          %s225 = smul.addr %s20, 2
          %s226 = smul.addr %s225, 8
          %s227 = scalar_lea.hbm %s2, %s226
          %s229 = sshll.u32 %s219, 4
          %s230 = int_to_ptr.vmem [resolvable:$true] %s229
          %s231 = sshll.u32 %s227, 4
          %s232 = int_to_ptr.hbm [resolvable:$true] %s231
          %234 = dma.vmem_to_hbm [thread:$0]  %s230, 256, %s232, %s216
        $region40: #{_rmsnorm_2d.1} parent=27 // pred_fallthru
          _
      $region28: #{_rmsnorm_2d.1} parent=5 // pred_fallthru
        _
      %p235 = scmp.le.s32.totalorder 2, %s15
      // Predicated region
      $region41: #{_rmsnorm_2d.1} parent=5 // pred_check
        %p236 = pneg %p235
      $region42: #{_rmsnorm_2d.1} parent=5 // pred_check_branch
        %238 = sbr.rel (%p236) target = $region44
      $region43: #{_rmsnorm_2d.1} parent=5 // pred_region
        %s239 = ssub.s32 %s15, 2
        // Predicated region
        $region45: #{_rmsnorm_2d.1} parent=43 // pred_check
          %p240 = pneg %p91
        $region46: #{_rmsnorm_2d.1} parent=43 // pred_check_branch
          %242 = sbr.rel (%p240) target = $region48
        $region47: #{_rmsnorm_2d.1} parent=43 // pred_region
          %s243 = sand.u32 %s76, 1
          %s244 = scalar_lea.sflag [#allocation4], %s243
          %s245 = sand.u32 %s76, 1
          %s246 = smul.addr %s245, 16
          %s247 = scalar_lea.vmem [#allocation7], %s246
          %249 = dma.done %s244, 256
        $region48: #{_rmsnorm_2d.1} parent=43 // pred_fallthru
          _
      $region44: #{_rmsnorm_2d.1} parent=5 // pred_fallthru
        _
    $region6: #{_rmsnorm_2d.1} parent=1 // loop_footer
      %s19 = sadd.s32 1, %s15
    $region7: #{_rmsnorm_2d.1} parent=1 // loop_footer_branch
      %14 = sbr.rel target = $region3
    $region8: #{_rmsnorm_2d.1} parent=1 // loop_exit
      _
    %250 = vsyncpa [#allocation3], 1
    %s251 = scalar_lea.sflag [#allocation3], 1
    %252 = vsyncpa %s251, 1
    %253 = vsyncpa [#allocation6], 1
    %254 = vsyncpa [#allocation4], 1
    %s255 = scalar_lea.sflag [#allocation4], 1
    %256 = vsyncpa %s255, 1

</llo_original>
